<compile_context>
chip_gen: v5e
topology: v5e:2x2
jax: 0.10.0
libtpu: 0.0.40
codegen_flags: <defaults>
</compile_context>

<pallas_src>
from functools import partial

import jax
import jax.numpy as jnp
from jax.experimental import pallas as pl
from jax.experimental.pallas import tpu as pltpu


# -----------------------------------------------------------------------------
# Config (mirrors the PyTorch `config` dict the module is built from)
# -----------------------------------------------------------------------------
CONFIG = {
    "patch_size": 4,
    "embedding_dims": 32,
    "in_channels": 4,
    "image_size": (16, 16),
    "batch_size": 2,
}


# -----------------------------------------------------------------------------
# Pallas kernel: fused patch matmul + (bias | class-token | pos-emb) addend
# -----------------------------------------------------------------------------
def _patch_embed_kernel(patch_ref, w_ref, add_ref, o_ref):
    """One row tile per grid step.

    patch_ref : (tm, K)  bf16  im2col patches (class-token rows are zeros)
    w_ref     : (K, E)   bf16  conv weight, rows in (c, kh, kw) order
    add_ref   : (tm, E)  f32   fused addend: cls+pos[0] on class rows,
                               bias+pos[1:] on patch rows
    o_ref     : (tm, E)  f32   output
    """
    emb = jnp.dot(patch_ref[...], w_ref[...], preferred_element_type=jnp.float32)
    # Single aligned full-tile store; no sublane-offset slicing.
    o_ref[...] = (emb + add_ref[...]).astype(o_ref.dtype)


# -----------------------------------------------------------------------------
# Forward pass (PatchEmbeddingLayer.forward)
# -----------------------------------------------------------------------------
def patch_embedding_forward(x, kernel_params, *, patch_size, row_tile=256):
    """x: (N, C, H, W) float32 -> (N, num_patches + 1, E) float32."""
    w2d, addend = kernel_params
    N, C, H, W = x.shape
    P = patch_size
    OH, OW = H // P, W // P
    NP = OH * OW
    K = C * P * P
    E = w2d.shape[1]
    S = NP + 1
    M = N * S
    assert addend.shape == (M, E), (addend.shape, (M, E))

    # im2col for a stride==kernel conv: pure layout plumbing, done in bf16 so
    # the glue copy moves half the bytes.  K ordering is (c, kh, kw), matching
    # torch's weight.reshape(E, C*P*P) row order; patch ordering is (oh, ow)
    # row-major, matching flatten(conv(x).permute(0, 2, 3, 1)).  A leading
    # ZERO row per batch fills the class-token slot, so the matmul output is
    # already laid out as the final sequence and no per-row special-casing is
    # needed in the kernel.
    patches = (
        x.astype(jnp.bfloat16)
        .reshape(N, C, OH, P, OW, P)
        .transpose(0, 2, 4, 1, 3, 5)
        .reshape(N, NP, K)
    )
    patches = jnp.pad(patches, ((0, 0), (1, 0), (0, 0)))  # class-token slot = 0
    patches = patches.reshape(M, K)
    # TODO(synk): for large images, extract patches in-kernel from an NHWC
    # input (BlockSpec over bands of P image rows) to remove this extra HBM
    # round trip of the activation.

    tm = min(row_tile, M)          # toy config: tm == M == 34 -> grid=(1,)
    grid = (pl.cdiv(M, tm),)

    out2d = pl.pallas_call(
        _patch_embed_kernel,
        grid=grid,
        out_shape=jax.ShapeDtypeStruct((M, E), jnp.float32),
        in_specs=[
            pl.BlockSpec((tm, K), lambda i: (i, 0)),   # patches: per-row-tile
            pl.BlockSpec((K, E), lambda i: (0, 0)),    # weight:  grid-invariant
            pl.BlockSpec((tm, E), lambda i: (i, 0)),   # fused addend: per-row-tile
        ],
        out_specs=pl.BlockSpec((tm, E), lambda i: (i, 0)),
        compiler_params=pltpu.CompilerParams(
            dimension_semantics=("parallel",),         # row tiles independent
        ),
    )(patches, w2d, addend)

    # (M, E) and (N, S, E) share the same contiguous layout -> free bitcast.
    return out2d.reshape(N, S, E)


# -----------------------------------------------------------------------------
# Parameter init (deterministic, mirrors the PyTorch module's shapes)
# -----------------------------------------------------------------------------
def init_params(config, key):
    P = config["patch_size"]
    C = config["in_channels"]
    E = config["embedding_dims"]
    N = config["batch_size"]
    H, W = config["image_size"]
    NP = (H * W) // (P * P)

    k_w, k_b, k_cls, k_pos = jax.random.split(key, 4)
    fan_in = C * P * P
    bound = 1.0 / (fan_in ** 0.5)
    # nn.Conv2d default-style init.
    w = jax.random.uniform(k_w, (E, C, P, P), jnp.float32, -bound, bound)
    b = jax.random.uniform(k_b, (E,), jnp.float32, -bound, bound)
    # class_token_embeddings / position_embeddings: torch.rand -> uniform [0, 1).
    cls = jax.random.uniform(k_cls, (N, 1, E), jnp.float32)
    pos = jax.random.uniform(k_pos, (1, NP + 1, E), jnp.float32)

    # Kernel-side layouts, computed ONCE (not per forward call):
    #   weight (E, C, P, P) -> (K, E) bf16 for the MXU
    #   fused addend (N*(NP+1), E) f32:
    #     row b*(NP+1)       = cls[b] + pos[0]          (class-token slot)
    #     rows b*(NP+1)+1 .. = bias   + pos[1:]         (patch rows)
    w2d = w.reshape(E, C * P * P).T.astype(jnp.bfloat16)
    addend = jnp.concatenate(
        [cls + pos[:, 0:1, :],
         jnp.broadcast_to(b.reshape(1, 1, E), (N, NP, E)) + pos[:, 1:, :]],
        axis=1,
    ).reshape(N * (NP + 1), E)

    kernel_params = (w2d, addend)
    raw_params = (w, b, cls, pos)
    return kernel_params, raw_params


# -----------------------------------------------------------------------------
# Pure-JAX reference (mirrors the PyTorch forward exactly, f32 throughout)
# -----------------------------------------------------------------------------
def reference_forward(x, raw_params, *, patch_size):
    w, b, cls, pos = raw_params
    y = jax.lax.conv_general_dilated(
        x, w,
        window_strides=(patch_size, patch_size),
        padding="VALID",
        dimension_numbers=("NCHW", "OIHW", "NCHW"),
    )
    y = y + b.reshape(1, -1, 1, 1)
    N, E, OH, OW = y.shape
    y = jnp.transpose(y, (0, 2, 3, 1)).reshape(N, OH * OW, E)
    return jnp.concatenate([cls, y], axis=1) + pos


# -----------------------------------------------------------------------------
# Main
# -----------------------------------------------------------------------------
if __name__ == "__main__":
    key = jax.random.PRNGKey(0)
    key, kx = jax.random.split(key)

    N, C = CONFIG["batch_size"], CONFIG["in_channels"]
    H, W = CONFIG["image_size"]
    P, E = CONFIG["patch_size"], CONFIG["embedding_dims"]
    NP = (H * W) // (P * P)

    x = jax.random.normal(kx, (N, C, H, W), jnp.float32)
    kernel_params, raw_params = init_params(CONFIG, key)

    fwd = jax.jit(partial(patch_embedding_forward, patch_size=P))
    out = jax.block_until_ready(fwd(x, kernel_params))

    assert out.shape == (N, NP + 1, E), out.shape

    ref = reference_forward(x, raw_params, patch_size=P)
    max_err = float(jnp.max(jnp.abs(out - ref)))
    # bf16 matmul operands with f32 accumulation: small rounding error vs f32 ref.
    assert jnp.allclose(out, ref, rtol=2e-2, atol=2e-2), max_err

    print("KERNEL_OK")
</pallas_src>

<mosaic_0001>
module attributes {stable_mosaic.version = 11 : i64} {
  func.func @_patch_embed_kernel(%arg0: i32, %arg1: memref<34x64xbf16, #tpu.memory_space<vmem>>, %arg2: memref<64x32xbf16, #tpu.memory_space<vmem>>, %arg3: memref<34x32xf32, #tpu.memory_space<vmem>>, %arg4: memref<34x32xf32, #tpu.memory_space<vmem>>) attributes {dimension_semantics = [#tpu.dimension_semantics<parallel>], iteration_bounds = array<i64: 1>, scalar_prefetch = 0 : i64, scratch_operands = 0 : i64, tpu.core_type = #tpu.core_type<tc>, window_params = [{transform_indices = @transform_0, window_bounds = array<i64: 34, 64>}, {pipeline_mode = #tpu.pipeline_mode<synchronous>, transform_indices = @transform_1, window_bounds = array<i64: 64, 32>}, {transform_indices = @transform_2, window_bounds = array<i64: 34, 32>}, {transform_indices = @transform_3, window_bounds = array<i64: 34, 32>}]} {
    %c0 = arith.constant 0 : index
    %c0_0 = arith.constant 0 : index
    %0 = vector.load %arg1[%c0, %c0_0] : memref<34x64xbf16, #tpu.memory_space<vmem>>, vector<34x64xbf16>
    %c0_1 = arith.constant 0 : index
    %c0_2 = arith.constant 0 : index
    %1 = vector.load %arg2[%c0_1, %c0_2] : memref<64x32xbf16, #tpu.memory_space<vmem>>, vector<64x32xbf16>
    %cst = arith.constant dense<0.000000e+00> : vector<34x32xf32>
    %2 = tpu.matmul %0, %1, %cst {dimension_numbers = #tpu.dot_dimension_numbers<[1], [0], [0], [1], [0, 0, 1, 1], [], []>} : vector<34x64xbf16>, vector<64x32xbf16>, vector<34x32xf32> -> vector<34x32xf32>
    %c0_3 = arith.constant 0 : index
    %c0_4 = arith.constant 0 : index
    %3 = vector.load %arg3[%c0_3, %c0_4] : memref<34x32xf32, #tpu.memory_space<vmem>>, vector<34x32xf32>
    %4 = arith.addf %2, %3 : vector<34x32xf32>
    %c0_5 = arith.constant 0 : index
    %c0_6 = arith.constant 0 : index
    %5 = vector.load %arg4[%c0_5, %c0_6] : memref<34x32xf32, #tpu.memory_space<vmem>>, vector<34x32xf32>
    tpu.vector_store %arg4[%c0_5, %c0_6], %4 {strides = array<i32>} : memref<34x32xf32, #tpu.memory_space<vmem>>, vector<34x32xf32>,
    return
  }
  func.func @transform_0(%arg0: i32) -> (i32, i32) {
    %c0_i32 = arith.constant 0 : i32
    %c0_i32_0 = arith.constant 0 : i32
    return %arg0, %c0_i32 : i32, i32
  }
  func.func @transform_1(%arg0: i32) -> (i32, i32) {
    %c0_i32 = arith.constant 0 : i32
    %c0_i32_0 = arith.constant 0 : i32
    %c0_i32_1 = arith.constant 0 : i32
    return %c0_i32, %c0_i32_0 : i32, i32
  }
  func.func @transform_2(%arg0: i32) -> (i32, i32) {
    %c0_i32 = arith.constant 0 : i32
    %c0_i32_0 = arith.constant 0 : i32
    return %arg0, %c0_i32 : i32, i32
  }
  func.func @transform_3(%arg0: i32) -> (i32, i32) {
    %c0_i32 = arith.constant 0 : i32
    %c0_i32_0 = arith.constant 0 : i32
    return %arg0, %c0_i32 : i32, i32
  }
}

</mosaic_0001>

<llo_original>
// kernel: patch_embedding_forward.1
$region0: #{patch_embedding_forward.1}
  #allocation0 [shape = 'u32[]', space=smem, size = 0x4, offset = 0x4, fixed_abs, tag = 'smem constant byte address 0x4 - core index']
  #allocation1 [shape = 'u32[72,128]{1,0:T(1,128)}', space=vmem, size = 0x9000, scoped, tag = 'internal scratch']
  %s0 = inlined_call_operand.vmem [shape: bf16[34,64], index: 0, kind: input, shape index: {}]
  %s1 = inlined_call_operand.vmem [shape: bf16[64,32], index: 1, kind: input, shape index: {}]
  %s2 = inlined_call_operand.vmem [shape: f32[34,32], index: 2, kind: input, shape index: {}]
  %s3 = inlined_call_operand.vmem [shape: f32[34,32], index: 3, kind: output, shape index: {}]
  %s4 = sld [smem:[#allocation0]]
  $region22: #{patch_embedding_forward.1} parent=0
    _
  %s6 = ssub.s32 1, %s4
  %s7 = scalar_select 0, %s6, %s4
  // Predicated region
  $region2: #{patch_embedding_forward.1} parent=0 // pred_check
    _
  $region3: #{patch_embedding_forward.1} parent=0 // pred_check_branch
    %9 = sbr.rel (0) target = $region5
  $region4: #{patch_embedding_forward.1} parent=0 // pred_region
    _
  $region5: #{patch_embedding_forward.1} parent=0 // pred_fallthru
    _
  // Predicated region
  $region6: #{patch_embedding_forward.1} parent=0 // pred_check
    _
  $region7: #{patch_embedding_forward.1} parent=0 // pred_check_branch
    %11 = sbr.rel (0) target = $region9
  $region8: #{patch_embedding_forward.1} parent=0 // pred_region
    _
  $region9: #{patch_embedding_forward.1} parent=0 // pred_fallthru
    _
  // Predicated region
  $region10: #{patch_embedding_forward.1} parent=0 // pred_check
    _
  $region11: #{patch_embedding_forward.1} parent=0 // pred_check_branch
    %13 = sbr.rel (0) target = $region13
  $region12: #{patch_embedding_forward.1} parent=0 // pred_region
    _
  $region13: #{patch_embedding_forward.1} parent=0 // pred_fallthru
    _
  %v15 = vld [vmem:[%s0] sm:$0xf]
  %v16 = vld [vmem:[%s0 + $0x4] sm:$0xf]
  %v17 = vld [vmem:[%s0 + $0x8] sm:$0xf]
  %v18 = vld [vmem:[%s0 + $0xc] sm:$0xf]
  %v19 = vld [vmem:[%s0 + $0x10] sm:$0x1]
  %v20 = vld [vmem:[%s1] sm:$0xf]
  %v21 = vld [vmem:[%s1 + $0x4] sm:$0xf]
  %v22 = vld [vmem:[%s1 + $0x8] sm:$0xf]
  %v23 = vld [vmem:[%s1 + $0xc] sm:$0xf]
  %v24 = vld [vmem:[%s1 + $0x10] sm:$0xf]
  %v25 = vld [vmem:[%s1 + $0x14] sm:$0xf]
  %v26 = vld [vmem:[%s1 + $0x18] sm:$0xf]
  %v27 = vld [vmem:[%s1 + $0x1c] sm:$0xf]
  %v28 = vld [vmem:[%s2] sm:$0xff]
  %v29 = vld [vmem:[%s2 + $0x8] sm:$0xff]
  %v30 = vld [vmem:[%s2 + $0x10] sm:$0xff]
  %v31 = vld [vmem:[%s2 + $0x18] sm:$0xff]
  %v32 = vld [vmem:[%s2 + $0x20] sm:$0x3]
  %v38 = vunpack.c.l.b16 %v15
  %v39 = vunpack.c.l.b16 %v16
  %v40 = vunpack.c.l.b16 %v17
  %v41 = vunpack.c.l.b16 %v18
  %v42 = vunpack.c.l.b16 %v19
  %v43 = vpack.c.b16 %v39, %v38
  %v44 = vpack.c.b16 %v41, %v40
  %v45 = vpack.c.b16 %v42, %v42
  %v54 = vunpack.c.l.b16 %v20
  %v55 = vunpack.c.l.b16 %v21
  %v56 = vunpack.c.l.b16 %v22
  %v57 = vunpack.c.l.b16 %v23
  %v58 = vunpack.c.l.b16 %v24
  %v59 = vunpack.c.l.b16 %v25
  %v60 = vunpack.c.l.b16 %v26
  %v61 = vunpack.c.l.b16 %v27
  %v62 = vpack.c.b16 %v55, %v54
  %v63 = vpack.c.b16 %v57, %v56
  %v64 = vpack.c.b16 %v59, %v58
  %v65 = vpack.c.b16 %v61, %v60
  %vm70 = vcmask 523264
  %v72 = vsel %vm70, %v43, 0
  %v75 = vsel %vm70, %v44, 0
  %v78 = vsel %vm70, %v45, 0
  %80 = vmatpush.bf16.msra.mxu0 0
  %81 = vmatpush.bf16.msra.mxu0 0
  %82 = vmatpush.bf16.msra.mxu0 0
  %83 = vmatpush.bf16.msra.mxu0 0
  %84 = vmatpush.bf16.msra.mxu0 %v65
  %85 = vmatpush.bf16.msra.mxu0 %v64
  %86 = vmatpush.bf16.msra.mxu0 %v63
  %87 = vmatpush.bf16.msra.mxu0 %v62
  %88 = vmatmul.bf16.gmra.mxu0 %v72
  %v89 = vpop.f32.mrf.mxu0
  %v90 = vadd.f32 %v28, %v89
  %v91 = vpop.f32.mrf.mxu0
  %v92 = vadd.f32 %v29, %v91
  %93 = vmatmul.bf16.gmra.mxu0 %v75
  %v94 = vpop.f32.mrf.mxu0
  %v95 = vadd.f32 %v30, %v94
  %v96 = vpop.f32.mrf.mxu0
  %v97 = vadd.f32 %v31, %v96
  %98 = vmatmul.bf16.gmra.mxu0 %v78
  %v99 = vpop.f32.mrf.mxu0
  %v100 = vadd.f32 %v32, %v99
  %v101 = vpop.f32.mrf.mxu0
  %102 = vdwg.mxu0
  %vm103 = vcmask 261120
  %104 = vst.msk [vmem:[%s3] sm:$0xff] %vm103, %v90
  %105 = vst.msk [vmem:[%s3 + $0x8] sm:$0xff] %vm103, %v92
  %106 = vst.msk [vmem:[%s3 + $0x10] sm:$0xff] %vm103, %v95
  %107 = vst.msk [vmem:[%s3 + $0x18] sm:$0xff] %vm103, %v97
  %vm108 = vcmask 254976
  %109 = vst.msk [vmem:[%s3 + $0x20] sm:$0x3] %vm108, %v100
  // Predicated region
  $region14: #{patch_embedding_forward.1} parent=0 // pred_check
    _
  $region15: #{patch_embedding_forward.1} parent=0 // pred_check_branch
    %111 = sbr.rel (0) target = $region17
  $region16: #{patch_embedding_forward.1} parent=0 // pred_region
    _
  $region17: #{patch_embedding_forward.1} parent=0 // pred_fallthru
    _
  // Predicated region
  $region18: #{patch_embedding_forward.1} parent=0 // pred_check
    _
  $region19: #{patch_embedding_forward.1} parent=0 // pred_check_branch
    %113 = sbr.rel (0) target = $region21
  $region20: #{patch_embedding_forward.1} parent=0 // pred_region
    _
  $region21: #{patch_embedding_forward.1} parent=0 // pred_fallthru
    _

</llo_original>
